<compile_context>
chip_gen: v7x
topology: tpu7x:2x2x1
jax: 0.10.0
libtpu: 0.0.40
codegen_flags: <defaults>
</compile_context>

<pallas_src>
import jax
import jax.numpy as jnp
from jax import lax
from jax.experimental import pallas as pl
from jax.experimental.pallas import tpu as pltpu


def _round_up(x, m):
    return (x + m - 1) // m * m


def _masked_ce_kernel(logits_ref, tgt_ref, wgt_ref, out_ref):
    # logits_ref: (RT, Vp)     input dtype (bf16 / f32)
    # tgt_ref   : (RT, 1)      int32 target ids
    # wgt_ref   : (RT, 1)      f32 {0,1} sequence-mask weight
    # out_ref   : (1, 8, 128)  f32 per-tile partial sum (scalar, broadcast)
    x = logits_ref[...].astype(jnp.float32)                       # (RT, Vp)

    # logsumexp over the vocab (lane) axis.
    m = jnp.max(x, axis=-1, keepdims=True)                        # (RT, 1)
    lse = m + jnp.log(jnp.sum(jnp.exp(x - m), axis=-1, keepdims=True))

    # Gather the target logit via a one-hot select (no log_probs materialized).
    vocab_ids = lax.broadcasted_iota(jnp.int32, x.shape, 1)       # (RT, Vp)
    onehot = vocab_ids == tgt_ref[...]                            # (RT, Vp) bool
    tgt_logit = jnp.sum(jnp.where(onehot, x, 0.0), axis=-1, keepdims=True)

    nll = lse - tgt_logit                                         # (RT, 1)
    partial = jnp.sum(nll * wgt_ref[...])                         # scalar f32

    # Lane-dense store of the per-tile partial (wrapper reads [:, 0, 0]).
    out_ref[...] = jnp.broadcast_to(partial, out_ref.shape)


def _choose_row_tile(rows, vp, itemsize, target_bytes=4 * 1024 * 1024):
    """Row tile (multiple of 8) giving ~target_bytes of logits per block."""
    per_row = vp * itemsize
    t = max(8, target_bytes // per_row)
    t = min(t, 1024)                      # diminishing returns past ~1k rows
    t = min(t, _round_up(rows, 8))        # never bigger than the (padded) input
    return int(max(8, (t // 8) * 8))


def masked_cross_entropy_loss(logits, target, tgt_lens, *, row_tile=None):
    """logits: (T, B, V) float (f32 or bf16); target: (T, B) int; tgt_lens: (B,) int."""
    T, B, V = logits.shape
    R = T * B

    x = logits.reshape(R, V)                      # keep original dtype
    tgt = target.reshape(R).astype(jnp.int32)

    # Per-row validity weight: row r = t*B + b is valid iff t < tgt_lens[b].
    lens = tgt_lens.astype(jnp.int32)
    t_idx = jnp.arange(T, dtype=jnp.int32)[:, None]
    wgt = (t_idx < lens[None, :]).astype(jnp.float32).reshape(R)

    # Lane-dense vocab: pad to a multiple of 128 only when needed (extra HBM
    # pass is skipped for already-aligned production vocab sizes).
    Vp = _round_up(V, 128)
    if Vp != V:
        x = jnp.pad(x, ((0, 0), (0, Vp - V)), constant_values=-1e30)

    itemsize = jnp.dtype(x.dtype).itemsize
    if row_tile is None:
        row_tile = _choose_row_tile(R, Vp, itemsize)
    Rp = _round_up(R, row_tile)
    if Rp != R:
        x = jnp.pad(x, ((0, Rp - R), (0, 0)))     # padded rows: finite logits
        tgt = jnp.pad(tgt, (0, Rp - R))           # padded targets: id 0
        wgt = jnp.pad(wgt, (0, Rp - R))           # padded rows: weight 0

    tgt2 = tgt.reshape(Rp, 1)
    wgt2 = wgt.reshape(Rp, 1)
    num_tiles = Rp // row_tile

    partials = pl.pallas_call(
        _masked_ce_kernel,
        out_shape=jax.ShapeDtypeStruct((num_tiles, 8, 128), jnp.float32),
        grid_spec=pltpu.PrefetchScalarGridSpec(
            num_scalar_prefetch=0,
            grid=(num_tiles,),
            in_specs=[
                pl.BlockSpec((row_tile, Vp), lambda i: (i, 0)),
                pl.BlockSpec((row_tile, 1), lambda i: (i, 0)),
                pl.BlockSpec((row_tile, 1), lambda i: (i, 0)),
            ],
            out_specs=pl.BlockSpec((1, 8, 128), lambda i: (i, 0, 0)),
        ),
        compiler_params=pltpu.CompilerParams(
            dimension_semantics=("parallel",)),   # independent tiles: 2-TC ok
    )(x, tgt2, wgt2)

    denom = jnp.sum(lens).astype(jnp.float32)
    # NOTE: like the PyTorch module, sum(tgt_lens) == 0 yields inf/nan.
    # NOTE: out-of-range target ids contribute 0 loss (one-hot never matches).
    return jnp.sum(partials[:, 0, 0]) / denom


def _reference(logits, target, tgt_lens):
    T, B, V = logits.shape
    logp = jax.nn.log_softmax(logits.astype(jnp.float32), axis=-1)
    nll = -jnp.take_along_axis(logp, target[..., None].astype(jnp.int32),
                               axis=-1)[..., 0]                     # (T, B)
    t_idx = jnp.arange(T)[:, None]
    mask = (t_idx < tgt_lens[None, :]).astype(jnp.float32)
    return jnp.sum(nll * mask) / jnp.sum(tgt_lens).astype(jnp.float32)


if __name__ == "__main__":
    key = jax.random.PRNGKey(0)

    # Test 1: small f32 shapes, single tile, vocab padded 32 -> 128.
    T, B, V = 16, 2, 32
    k1, k2 = jax.random.split(key)
    logits = jax.random.normal(k1, (T, B, V), dtype=jnp.float32)
    target = jax.random.randint(k2, (T, B), 0, V, dtype=jnp.int32)
    tgt_lens = jnp.array([12, 7], dtype=jnp.int32)

    loss = masked_cross_entropy_loss(logits, target, tgt_lens)
    loss = jax.block_until_ready(loss)
    ref = _reference(logits, target, tgt_lens)
    assert jnp.allclose(loss, ref, rtol=1e-5, atol=1e-5), (loss, ref)

    # Test 2: bf16 logits, multiple tiles (row_tile=32 -> 3 tiles), vocab
    # padding 200 -> 256, a zero-length sequence in the batch.
    T2, B2, V2 = 24, 4, 200
    k3, k4 = jax.random.split(k1)
    logits2 = jax.random.normal(k3, (T2, B2, V2), dtype=jnp.bfloat16)
    target2 = jax.random.randint(k4, (T2, B2), 0, V2, dtype=jnp.int32)
    tgt_lens2 = jnp.array([20, 0, 24, 5], dtype=jnp.int32)

    loss2 = masked_cross_entropy_loss(logits2, target2, tgt_lens2, row_tile=32)
    loss2 = jax.block_until_ready(loss2)
    ref2 = _reference(logits2, target2, tgt_lens2)
    assert jnp.allclose(loss2, ref2, rtol=1e-4, atol=1e-5), (loss2, ref2)

    print("KERNEL_OK")
</pallas_src>

<mosaic_0001>
module attributes {stable_mosaic.version = 11 : i64} {
  func.func @_masked_ce_kernel(%arg0: i32, %arg1: memref<32x128xf32, #tpu.memory_space<vmem>>, %arg2: memref<32x1xi32, #tpu.memory_space<vmem>>, %arg3: memref<32x1xf32, #tpu.memory_space<vmem>>, %arg4: memref<1x8x128xf32, #tpu.memory_space<vmem>>) attributes {dimension_semantics = [#tpu.dimension_semantics<parallel>], iteration_bounds = array<i64: 1>, scalar_prefetch = 0 : i64, scratch_operands = 0 : i64, tpu.core_type = #tpu.core_type<tc>, window_params = [{transform_indices = @transform_0, window_bounds = array<i64: 32, 128>}, {transform_indices = @transform_1, window_bounds = array<i64: 32, 1>}, {transform_indices = @transform_2, window_bounds = array<i64: 32, 1>}, {transform_indices = @transform_3, window_bounds = array<i64: 1, 8, 128>}]} {
    %c0 = arith.constant 0 : index
    %c0_0 = arith.constant 0 : index
    %0 = vector.load %arg1[%c0, %c0_0] : memref<32x128xf32, #tpu.memory_space<vmem>>, vector<32x128xf32>
    %cst = arith.constant dense<0xFF800000> : vector<32xf32>
    %1 = vector.multi_reduction <maximumf>, %0, %cst [1] : vector<32x128xf32> to vector<32xf32>
    %2 = vector.shape_cast %1 : vector<32xf32> to vector<32x1xf32>
    %3 = vector.broadcast %2 : vector<32x1xf32> to vector<32x128xf32>
    %4 = arith.subf %0, %3 : vector<32x128xf32>
    %5 = math.exp %4 : vector<32x128xf32>
    %cst_1 = arith.constant dense<0.000000e+00> : vector<32xf32>
    %6 = vector.multi_reduction <add>, %5, %cst_1 [1] : vector<32x128xf32> to vector<32xf32>
    %7 = vector.shape_cast %6 : vector<32xf32> to vector<32x1xf32>
    %8 = math.log %7 : vector<32x1xf32>
    %9 = arith.addf %2, %8 : vector<32x1xf32>
    %10 = tpu.iota {dimensions = array<i32: 1>} : vector<32x128xi32>
    %c0_2 = arith.constant 0 : index
    %c0_3 = arith.constant 0 : index
    %11 = vector.load %arg2[%c0_2, %c0_3] : memref<32x1xi32, #tpu.memory_space<vmem>>, vector<32x1xi32>
    %12 = vector.broadcast %11 : vector<32x1xi32> to vector<32x128xi32>
    %13 = arith.cmpi eq, %10, %12 : vector<32x128xi32>
    %cst_4 = arith.constant 0.000000e+00 : f32
    %14 = vector.broadcast %cst_4 : f32 to vector<32x128xf32>
    %15 = arith.select %13, %0, %14 : vector<32x128xi1>, vector<32x128xf32>
    %cst_5 = arith.constant dense<0.000000e+00> : vector<32xf32>
    %16 = vector.multi_reduction <add>, %15, %cst_5 [1] : vector<32x128xf32> to vector<32xf32>
    %17 = vector.shape_cast %16 : vector<32xf32> to vector<32x1xf32>
    %18 = arith.subf %9, %17 : vector<32x1xf32>
    %c0_6 = arith.constant 0 : index
    %c0_7 = arith.constant 0 : index
    %19 = vector.load %arg3[%c0_6, %c0_7] : memref<32x1xf32, #tpu.memory_space<vmem>>, vector<32x1xf32>
    %20 = arith.mulf %18, %19 : vector<32x1xf32>
    %21 = vector.shape_cast %20 : vector<32x1xf32> to vector<1x32x1xf32>
    %cst_8 = arith.constant dense<0.000000e+00> : vector<1xf32>
    %22 = vector.multi_reduction <add>, %21, %cst_8 [1, 2] : vector<1x32x1xf32> to vector<1xf32>
    %23 = vector.shape_cast %22 : vector<1xf32> to vector<1x1x1xf32>
    %24 = vector.extract %23[0, 0, 0] : f32 from vector<1x1x1xf32>
    %25 = vector.broadcast %24 : f32 to vector<1x8x128xf32>
    %c0_9 = arith.constant 0 : index
    %c0_10 = arith.constant 0 : index
    %c0_11 = arith.constant 0 : index
    %26 = vector.load %arg4[%c0_9, %c0_10, %c0_11] : memref<1x8x128xf32, #tpu.memory_space<vmem>>, vector<1x8x128xf32>
    tpu.vector_store %arg4[%c0_9, %c0_10, %c0_11], %25 {strides = array<i32>} : memref<1x8x128xf32, #tpu.memory_space<vmem>>, vector<1x8x128xf32>,
    return
  }
  func.func @transform_0(%arg0: i32) -> (i32, i32) {
    %c0_i32 = arith.constant 0 : i32
    %c0_i32_0 = arith.constant 0 : i32
    return %arg0, %c0_i32 : i32, i32
  }
  func.func @transform_1(%arg0: i32) -> (i32, i32) {
    %c0_i32 = arith.constant 0 : i32
    %c0_i32_0 = arith.constant 0 : i32
    return %arg0, %c0_i32 : i32, i32
  }
  func.func @transform_2(%arg0: i32) -> (i32, i32) {
    %c0_i32 = arith.constant 0 : i32
    %c0_i32_0 = arith.constant 0 : i32
    return %arg0, %c0_i32 : i32, i32
  }
  func.func @transform_3(%arg0: i32) -> (i32, i32, i32) {
    %c0_i32 = arith.constant 0 : i32
    %c0_i32_0 = arith.constant 0 : i32
    %c0_i32_1 = arith.constant 0 : i32
    return %arg0, %c0_i32, %c0_i32_0 : i32, i32, i32
  }
}

</mosaic_0001>

<llo_original>
// kernel: tpu_custom_call.1
$region0: #{tpu_custom_call.1}
  #allocation0 [shape = 'u32[]', space=smem, size = 0x4, offset = 0x4, fixed_abs, tag = 'smem constant byte address 0x4 - core index']
  #allocation1 [shape = 'u32[144,128]{1,0:T(1,128)}', space=vmem, size = 0x12000, scoped, tag = 'internal scratch']
  %s0 = inlined_call_operand.vmem [shape: f32[32,128], index: 0, kind: input, shape index: {}]
  %s1 = inlined_call_operand.vmem [shape: s32[32,1], index: 1, kind: input, shape index: {}]
  %s2 = inlined_call_operand.vmem [shape: f32[32,1], index: 2, kind: input, shape index: {}]
  %s3 = inlined_call_operand.hbm [shape: f32[1,8,128], index: 3, kind: output, shape index: {}]
  %s4 = sld [smem:[#allocation0]]
  $region22: #{tpu_custom_call.1} parent=0
    _
  %s6 = ssub.s32 1, %s4
  %s7 = scalar_select 0, %s6, %s4
  $region1: #{tpu_custom_call.1} parent=0
    #allocation2 [shape = 'u8[4096]{0}', space=vmem, size = 0x1000, scoped, tag = 'output window, operand 0, single buffered']
    #allocation3 [shape = 's32[1]{0}', space=sflag, size = 0x4, scoped, tag = 'scoped memory for tpu_custom_call.1']
    %8 = vsyncpa [#allocation3], 0
    // Predicated region
    $region2: #{tpu_custom_call.1} parent=1 // pred_check
      _
    $region3: #{tpu_custom_call.1} parent=1 // pred_check_branch
      %10 = sbr.rel (0) target = $region5
    $region4: #{tpu_custom_call.1} parent=1 // pred_region
      _
    $region5: #{tpu_custom_call.1} parent=1 // pred_fallthru
      _
    // Predicated region
    $region6: #{tpu_custom_call.1} parent=1 // pred_check
      _
    $region7: #{tpu_custom_call.1} parent=1 // pred_check_branch
      %12 = sbr.rel (0) target = $region9
    $region8: #{tpu_custom_call.1} parent=1 // pred_region
      _
    $region9: #{tpu_custom_call.1} parent=1 // pred_fallthru
      _
    // Predicated region
    $region10: #{tpu_custom_call.1} parent=1 // pred_check
      _
    $region11: #{tpu_custom_call.1} parent=1 // pred_check_branch
      %14 = sbr.rel (0) target = $region13
    $region12: #{tpu_custom_call.1} parent=1 // pred_region
      _
    $region13: #{tpu_custom_call.1} parent=1 // pred_fallthru
      _
    %v15 = vld [vmem:[%s0] sm:$0xff]
    %v16 = vld [vmem:[%s0 + $0x8] sm:$0xff]
    %v17 = vld [vmem:[%s0 + $0x10] sm:$0xff]
    %v18 = vld [vmem:[%s0 + $0x18] sm:$0xff]
    %19 = vmax.xlane.f32.xlu0 %v15
    %v20 = vpop.xlane.xlu0 %19
    %21 = vmax.xlane.f32.xlu0 %v16
    %v22 = vpop.xlane.xlu0 %21
    %23 = vmax.xlane.f32.xlu0 %v17
    %v24 = vpop.xlane.xlu0 %23
    %25 = vmax.xlane.f32.xlu0 %v18
    %v26 = vpop.xlane.xlu0 %25
    %v27 = vsub.f32 %v15, %v20
    %v28 = vsub.f32 %v16, %v22
    %v29 = vsub.f32 %v17, %v24
    %v30 = vsub.f32 %v18, %v26
    %v31 = vmul.f32 %v27, 1.442695
    %v32 = vpow.pop %v31
    %v33 = vmul.f32 %v28, 1.442695
    %v34 = vpow.pop %v33
    %v35 = vmul.f32 %v29, 1.442695
    %v36 = vpow.pop %v35
    %v37 = vmul.f32 %v30, 1.442695
    %v38 = vpow.pop %v37
    %39 = vadd.xlane.f32.xlu0 %v32
    %v40 = vpop.xlane.xlu0 %39
    %41 = vadd.xlane.f32.xlu0 %v34
    %v42 = vpop.xlane.xlu0 %41
    %43 = vadd.xlane.f32.xlu0 %v36
    %v44 = vpop.xlane.xlu0 %43
    %45 = vadd.xlane.f32.xlu0 %v38
    %v46 = vpop.xlane.xlu0 %45
    %v47 = vlog2.pop %v40
    %v48 = vmul.f32 %v47, 0.6931472
    %v49 = vlog2.pop %v42
    %v50 = vmul.f32 %v49, 0.6931472
    %v51 = vlog2.pop %v44
    %v52 = vmul.f32 %v51, 0.6931472
    %v53 = vlog2.pop %v46
    %v54 = vmul.f32 %v53, 0.6931472
    %v55 = vadd.f32 %v20, %v48
    %v56 = vadd.f32 %v22, %v50
    %v57 = vadd.f32 %v24, %v52
    %v58 = vadd.f32 %v26, %v54
    %v59 = vlaneseq
    %v60 = vand.u32 %v59, 127
    %v61 = vld [vmem:[%s1] sm:$0xff]
    %v62 = vld [vmem:[%s1 + $0x8] sm:$0xff]
    %v63 = vld [vmem:[%s1 + $0x10] sm:$0xff]
    %v64 = vld [vmem:[%s1 + $0x18] sm:$0xff]
    %65 = vset.pattern.permute.xlu0 0
    %66 = vperm.xlu0 %65, %v61
    %v67 = vpop.permute.xlu0 %66
    %68 = vset.pattern.permute.xlu0 0
    %69 = vperm.xlu0 %68, %v62
    %v70 = vpop.permute.xlu0 %69
    %71 = vset.pattern.permute.xlu0 0
    %72 = vperm.xlu0 %71, %v63
    %v73 = vpop.permute.xlu0 %72
    %74 = vset.pattern.permute.xlu0 0
    %75 = vperm.xlu0 %74, %v64
    %v76 = vpop.permute.xlu0 %75
    %vm77 = vcmp.eq.s32.totalorder %v60, %v67
    %vm78 = vcmp.eq.s32.totalorder %v60, %v70
    %vm79 = vcmp.eq.s32.totalorder %v60, %v73
    %vm80 = vcmp.eq.s32.totalorder %v60, %v76
    %v81 = vsel %vm77, %v15, 0.0
    %v82 = vsel %vm78, %v16, 0.0
    %v83 = vsel %vm79, %v17, 0.0
    %v84 = vsel %vm80, %v18, 0.0
    %85 = vadd.xlane.f32.xlu0 %v81
    %v86 = vpop.xlane.xlu0 %85
    %87 = vadd.xlane.f32.xlu0 %v82
    %v88 = vpop.xlane.xlu0 %87
    %89 = vadd.xlane.f32.xlu0 %v83
    %v90 = vpop.xlane.xlu0 %89
    %91 = vadd.xlane.f32.xlu0 %v84
    %v92 = vpop.xlane.xlu0 %91
    %v93 = vsub.f32 %v55, %v86
    %v94 = vsub.f32 %v56, %v88
    %v95 = vsub.f32 %v57, %v90
    %v96 = vsub.f32 %v58, %v92
    %v97 = vld [vmem:[%s2] sm:$0xff]
    %v98 = vld [vmem:[%s2 + $0x8] sm:$0xff]
    %v99 = vld [vmem:[%s2 + $0x10] sm:$0xff]
    %v100 = vld [vmem:[%s2 + $0x18] sm:$0xff]
    %v101 = vmul.f32 %v93, %v97
    %v102 = vmul.f32 %v94, %v98
    %v103 = vmul.f32 %v95, %v99
    %v104 = vmul.f32 %v96, %v100
    %vm105 = vcmask 7168
    %v106 = vsel %vm105, %v101, 0.0
    %v107 = vsel %vm105, %v102, 0.0
    %v108 = vadd.f32 %v106, %v107
    %v109 = vsel %vm105, %v103, 0.0
    %v110 = vadd.f32 %v108, %v109
    %v111 = vsel %vm105, %v104, 0.0
    %v112 = vadd.f32 %v110, %v111
    %113 = vadd.xlane.f32.xlu0 %v112
    %v114 = vpop.xlane.xlu0 %113
    %v115 = vrot.slane %v114, 4
    %v116 = vadd.f32 %v114, %v115
    %v117 = vrot.slane %v116, 2
    %v118 = vadd.f32 %v116, %v117
    %v119 = vrot.slane %v118, 1
    %v120 = vadd.f32 %v118, %v119
    %s121 = vtos %v120
    %v122 = vstv %s121
    %123 = vst [vmem:[#allocation2] sm:$0xff] %v122
    // Predicated region
    $region14: #{tpu_custom_call.1} parent=1 // pred_check
      _
    $region15: #{tpu_custom_call.1} parent=1 // pred_check_branch
      %125 = sbr.rel (0) target = $region17
    $region16: #{tpu_custom_call.1} parent=1 // pred_region
      %s127 = ssub.s32 128, 128
      %128 = vsyncadd [#allocation3], %s127
      %s130 = sshll.u32 [#allocation2], 4
      %s131 = int_to_ptr.vmem [resolvable:$true] %s130
      %133 = dma.vmem_to_hbm [thread:$0]  %s131, 128, %s3, [#allocation3]
    $region17: #{tpu_custom_call.1} parent=1 // pred_fallthru
      _
    // Predicated region
    $region18: #{tpu_custom_call.1} parent=1 // pred_check
      _
    $region19: #{tpu_custom_call.1} parent=1 // pred_check_branch
      %135 = sbr.rel (0) target = $region21
    $region20: #{tpu_custom_call.1} parent=1 // pred_region
      %136 = dma.done [#allocation3], 128
    $region21: #{tpu_custom_call.1} parent=1 // pred_fallthru
      _
    %137 = vsyncpa [#allocation3], 1

</llo_original>
